<compile_context>
chip_gen: v7x
topology: tpu7x:2x2x1
jax: 0.10.0
libtpu: 0.0.40
codegen_flags: <defaults>
</compile_context>

<pallas_src>
import math

import jax
import jax.numpy as jnp
from jax.experimental import pallas as pl
from jax.experimental.pallas import tpu as pltpu


def _label_adapt_kernel(y_ref, w_ref, b_ref, o_ref):
    """One row-tile of out = fold(y) @ W_block_diag + b_folded.

    y_ref: (tile_r, k)      folded input labels
    w_ref: (k, k*H) f32     block-diagonal folded (weight + 1e-9)
    b_ref: (1, k*H) f32     folded bias
    o_ref: (tile_r, k*H)    output tile (lane-dense when k*H % 128 == 0)
    """
    y = y_ref[...].astype(jnp.float32)
    if w_ref.shape[0] == 1:
        # k == 1 fall-back: plain VPU broadcast (avoids a degenerate matmul).
        acc = y * w_ref[...]
    else:
        # Lane-dense path: fold k labels into the lane axis via one MXU matmul.
        acc = jnp.dot(
            y,
            w_ref[...],
            preferred_element_type=jnp.float32,
            precision=jax.lax.Precision.HIGHEST,
        )
    o_ref[...] = (acc + b_ref[...]).astype(o_ref.dtype)


def _round_up(x, m):
    return -(-x // m) * m


def label_adapt_heads(y, weight, bias, *, inverse=False,
                      target_block_bytes=4 * 1024 * 1024):
    """Pallas TPU implementation of LabelAdaptHeads.forward.

    Returns an array of shape (y.size, num_head).
    """
    num_head = weight.shape[-1]
    w = weight.reshape(-1).astype(jnp.float32) + 1e-9
    b = bias.reshape(-1).astype(jnp.float32)
    if inverse:
        # (y - b) / w  ==  y * (1/w) + (-b/w): same affine kernel, new params.
        w_eff = 1.0 / w
        b_eff = -b / w
    else:
        w_eff = w
        b_eff = b

    y_flat = y.reshape(-1)
    n = y_flat.shape[0]
    out_dtype = jnp.result_type(y.dtype, jnp.float32)
    if n == 0:
        return jnp.zeros((0, num_head), out_dtype)

    # Fold factor so the output lane width is a multiple of 128 (unmasked stores).
    k = 128 // math.gcd(num_head, 128)
    if n % k != 0:
        k = 1  # ragged fall-back: plain (N, H) layout, tail block masked by Pallas
    lane_w = k * num_head
    rows = n // k

    # Folded params (tiny, fp32).
    w_tiled = jnp.tile(w_eff, k)                                     # (k*H,)
    if k > 1:
        group = (jnp.arange(lane_w) // num_head)[None, :]            # (1, k*H)
        w2 = jnp.where(group == jnp.arange(k)[:, None], w_tiled[None, :], 0.0)
    else:
        w2 = w_tiled[None, :]
    b2 = jnp.tile(b_eff, k)[None, :]                                 # (1, k*H)
    y2 = y_flat.reshape(rows, k)

    # Row tile: ~4 MiB output blocks, multiple of 8; ensure >= 2 grid steps when
    # there is enough work (v7x megacore sharding of the 'parallel' axis).
    dsize = jnp.dtype(out_dtype).itemsize
    tile_r = max(8, (target_block_bytes // (lane_w * dsize)) // 8 * 8)
    if tile_r >= rows:
        tile_r = rows if rows <= 16 else min(rows, _round_up(-(-rows // 2), 8))
    grid = (pl.cdiv(rows, tile_r),)

    # Explicit VMEM budget: double-buffered in/out blocks + params + headroom,
    # kept well under v7x's 64 MiB physical VMEM.
    block_bytes = tile_r * lane_w * dsize + tile_r * k * y2.dtype.itemsize
    vmem_limit = int(min(48 << 20, max(16 << 20, 3 * block_bytes + (4 << 20))))

    out = pl.pallas_call(
        _label_adapt_kernel,
        out_shape=jax.ShapeDtypeStruct((rows, lane_w), out_dtype),
        grid_spec=pltpu.PrefetchScalarGridSpec(
            num_scalar_prefetch=0,
            grid=grid,
            in_specs=[
                pl.BlockSpec((tile_r, k), lambda i: (i, 0)),
                pl.BlockSpec((k, lane_w), lambda i: (0, 0)),
                pl.BlockSpec((1, lane_w), lambda i: (0, 0)),
            ],
            out_specs=pl.BlockSpec((tile_r, lane_w), lambda i: (i, 0)),
        ),
        compiler_params=pltpu.CompilerParams(
            dimension_semantics=("parallel",),
            vmem_limit_bytes=vmem_limit,
        ),
    )(y2, w2, b2)

    # Free reshape (same row-major element order) back to the logical (N, H).
    return out.reshape(n, num_head)


if __name__ == "__main__":
    key = jax.random.PRNGKey(0)
    k_w, k_y1, k_y2 = jax.random.split(key, 3)

    num_head = 8
    # Parameters mirroring the PyTorch init: weight ~ U(0.75, 1.25), bias = 1/8.
    weight = jax.random.uniform(k_w, (1, num_head), jnp.float32,
                                minval=0.75, maxval=1.25)
    bias = jnp.full((1, num_head), 1.0 / 8.0, jnp.float32)

    def ref_forward(y):
        return (weight.reshape(-1) + 1e-9) * y.reshape(-1, 1) + bias.reshape(-1)

    def ref_inverse(y):
        return (y.reshape(-1, 1) - bias.reshape(-1)) / (weight.reshape(-1) + 1e-9)

    # Case 1: lane-dense (folded) path — batch=2, seq=8 -> N=16 labels.
    y_a = jax.random.normal(k_y1, (2, 8), jnp.float32)
    out_a = jax.block_until_ready(label_adapt_heads(y_a, weight, bias))
    assert out_a.shape == (16, num_head)
    assert jnp.allclose(out_a, ref_forward(y_a), atol=1e-4, rtol=1e-4)

    # Case 2: ragged fall-back path (N not a multiple of the fold factor).
    y_b = jax.random.normal(k_y2, (3, 5), jnp.float32)
    out_b = jax.block_until_ready(label_adapt_heads(y_b, weight, bias))
    assert out_b.shape == (15, num_head)
    assert jnp.allclose(out_b, ref_forward(y_b), atol=1e-4, rtol=1e-4)

    # Case 3: inverse mode (same kernel, reparameterized affine).
    inv_a = jax.block_until_ready(label_adapt_heads(y_a, weight, bias, inverse=True))
    assert jnp.allclose(inv_a, ref_inverse(y_a), atol=1e-4, rtol=1e-4)

    print("KERNEL_OK")
</pallas_src>

<mosaic_0001>
module attributes {stable_mosaic.version = 11 : i64} {
  func.func @_label_adapt_kernel(%arg0: i32, %arg1: memref<1x16xf32, #tpu.memory_space<vmem>>, %arg2: memref<16x128xf32, #tpu.memory_space<vmem>>, %arg3: memref<1x128xf32, #tpu.memory_space<vmem>>, %arg4: memref<1x128xf32, #tpu.memory_space<vmem>>) attributes {dimension_semantics = [#tpu.dimension_semantics<parallel>], iteration_bounds = array<i64: 1>, scalar_prefetch = 0 : i64, scratch_operands = 0 : i64, tpu.core_type = #tpu.core_type<tc>, window_params = [{transform_indices = @transform_0, window_bounds = array<i64: 1, 16>}, {pipeline_mode = #tpu.pipeline_mode<synchronous>, transform_indices = @transform_1, window_bounds = array<i64: 16, 128>}, {pipeline_mode = #tpu.pipeline_mode<synchronous>, transform_indices = @transform_2, window_bounds = array<i64: 1, 128>}, {transform_indices = @transform_3, window_bounds = array<i64: 1, 128>}]} {
    %c0 = arith.constant 0 : index
    %c0_0 = arith.constant 0 : index
    %0 = vector.load %arg1[%c0, %c0_0] : memref<1x16xf32, #tpu.memory_space<vmem>>, vector<1x16xf32>
    %c0_1 = arith.constant 0 : index
    %c0_2 = arith.constant 0 : index
    %1 = vector.load %arg2[%c0_1, %c0_2] : memref<16x128xf32, #tpu.memory_space<vmem>>, vector<16x128xf32>
    %cst = arith.constant dense<0.000000e+00> : vector<1x128xf32>
    %2 = tpu.matmul %0, %1, %cst {dimension_numbers = #tpu.dot_dimension_numbers<[1], [0], [0], [1], [0, 0, 1, 1], [], []>, precision = #tpu.contract_precision<fp32>} : vector<1x16xf32>, vector<16x128xf32>, vector<1x128xf32> -> vector<1x128xf32>
    %c0_3 = arith.constant 0 : index
    %c0_4 = arith.constant 0 : index
    %3 = vector.load %arg3[%c0_3, %c0_4] : memref<1x128xf32, #tpu.memory_space<vmem>>, vector<1x128xf32>
    %4 = arith.addf %2, %3 : vector<1x128xf32>
    %c0_5 = arith.constant 0 : index
    %c0_6 = arith.constant 0 : index
    %5 = vector.load %arg4[%c0_5, %c0_6] : memref<1x128xf32, #tpu.memory_space<vmem>>, vector<1x128xf32>
    tpu.vector_store %arg4[%c0_5, %c0_6], %4 {strides = array<i32>} : memref<1x128xf32, #tpu.memory_space<vmem>>, vector<1x128xf32>,
    return
  }
  func.func @transform_0(%arg0: i32) -> (i32, i32) {
    %c0_i32 = arith.constant 0 : i32
    %c0_i32_0 = arith.constant 0 : i32
    return %arg0, %c0_i32 : i32, i32
  }
  func.func @transform_1(%arg0: i32) -> (i32, i32) {
    %c0_i32 = arith.constant 0 : i32
    %c0_i32_0 = arith.constant 0 : i32
    %c0_i32_1 = arith.constant 0 : i32
    return %c0_i32, %c0_i32_0 : i32, i32
  }
  func.func @transform_2(%arg0: i32) -> (i32, i32) {
    %c0_i32 = arith.constant 0 : i32
    %c0_i32_0 = arith.constant 0 : i32
    %c0_i32_1 = arith.constant 0 : i32
    return %c0_i32, %c0_i32_0 : i32, i32
  }
  func.func @transform_3(%arg0: i32) -> (i32, i32) {
    %c0_i32 = arith.constant 0 : i32
    %c0_i32_0 = arith.constant 0 : i32
    return %arg0, %c0_i32 : i32, i32
  }
}

</mosaic_0001>

<llo_original>
// kernel: tpu_custom_call.1
$region0: #{tpu_custom_call.1}
  #allocation0 [shape = 'u32[]', space=smem, size = 0x4, offset = 0x4, fixed_abs, tag = 'smem constant byte address 0x4 - core index']
  #allocation1 [shape = 'u32[144,128]{1,0:T(1,128)}', space=vmem, size = 0x12000, scoped, tag = 'internal scratch']
  %s0 = inlined_call_operand.hbm [shape: f32[1,16], index: 0, kind: input, shape index: {}]
  %s1 = inlined_call_operand.hbm [shape: f32[16,128], index: 1, kind: input, shape index: {}]
  %s2 = inlined_call_operand.vmem [shape: f32[1,128], index: 2, kind: input, shape index: {}]
  %s3 = inlined_call_operand.hbm [shape: f32[1,128], index: 3, kind: output, shape index: {}]
  %s4 = sld [smem:[#allocation0]]
  $region30: #{tpu_custom_call.1} parent=0
    _
  %s6 = ssub.s32 1, %s4
  %s7 = scalar_select 0, %s6, %s4
  $region1: #{tpu_custom_call.1} parent=0
    #allocation2 [shape = 'u8[512]{0}', space=vmem, size = 0x400, scoped, tag = 'input window, operand 0, single buffered']
    #allocation3 [shape = 's32[1]{0}', space=sflag, size = 0x4, scoped, tag = 'scoped memory for tpu_custom_call.1']
    #allocation4 [shape = 's32[1]{0}', space=sflag, size = 0x4, scoped, tag = 'scoped memory for tpu_custom_call.1']
    #allocation5 [shape = 'u8[8192]{0}', space=vmem, size = 0x2000, scoped, tag = 'input window, operand 1, single buffered']
    #allocation6 [shape = 's32[1]{0}', space=sflag, size = 0x4, scoped, tag = 'scoped memory for tpu_custom_call.1']
    #allocation7 [shape = 'u8[512]{0}', space=vmem, size = 0x400, scoped, tag = 'output window, operand 0, single buffered']
    %8 = vsyncpa [#allocation3], 0
    %9 = vsyncpa [#allocation6], 0
    %10 = vsyncpa [#allocation4], 0
    // Predicated region
    $region2: #{tpu_custom_call.1} parent=1 // pred_check
      _
    $region3: #{tpu_custom_call.1} parent=1 // pred_check_branch
      %12 = sbr.rel (0) target = $region5
    $region4: #{tpu_custom_call.1} parent=1 // pred_region
      %s14 = ssub.s32 16, 16
      %15 = vsyncadd [#allocation3], %s14
      %s17 = sshll.u32 [#allocation2], 4
      %s18 = int_to_ptr.vmem [resolvable:$true] %s17
      %20 = dma.hbm_to_vmem [thread:$0]  %s0, 16, %s18, [#allocation3]
    $region5: #{tpu_custom_call.1} parent=1 // pred_fallthru
      _
    // Predicated region
    $region6: #{tpu_custom_call.1} parent=1 // pred_check
      _
    $region7: #{tpu_custom_call.1} parent=1 // pred_check_branch
      %22 = sbr.rel (0) target = $region9
    $region8: #{tpu_custom_call.1} parent=1 // pred_region
      %s24 = ssub.s32 256, 256
      %25 = vsyncadd [#allocation6], %s24
      %s26 = sshll.u32 [#allocation5], 4
      %s27 = int_to_ptr.vmem [resolvable:$true] %s26
      %32 = dma.hbm_to_vmem [thread:$0]  %s1, 256, %s27, [#allocation6], 128, 128, 8
    $region9: #{tpu_custom_call.1} parent=1 // pred_fallthru
      _
    // Predicated region
    $region10: #{tpu_custom_call.1} parent=1 // pred_check
      _
    $region11: #{tpu_custom_call.1} parent=1 // pred_check_branch
      %34 = sbr.rel (0) target = $region13
    $region12: #{tpu_custom_call.1} parent=1 // pred_region
      _
    $region13: #{tpu_custom_call.1} parent=1 // pred_fallthru
      _
    // Predicated region
    $region14: #{tpu_custom_call.1} parent=1 // pred_check
      _
    $region15: #{tpu_custom_call.1} parent=1 // pred_check_branch
      %36 = sbr.rel (0) target = $region17
    $region16: #{tpu_custom_call.1} parent=1 // pred_region
      %37 = dma.done [#allocation3], 16
    $region17: #{tpu_custom_call.1} parent=1 // pred_fallthru
      _
    // Predicated region
    $region18: #{tpu_custom_call.1} parent=1 // pred_check
      _
    $region19: #{tpu_custom_call.1} parent=1 // pred_check_branch
      %39 = sbr.rel (0) target = $region21
    $region20: #{tpu_custom_call.1} parent=1 // pred_region
      %40 = dma.done [#allocation6], 256
    $region21: #{tpu_custom_call.1} parent=1 // pred_fallthru
      _
    %v41 = vld [vmem:[#allocation2] sm:$0x1]
    %v42 = vld [vmem:[#allocation5] sm:$0xff]
    %v43 = vld [vmem:[#allocation5 + $0x8] sm:$0xff]
    %v44 = vld [vmem:[%s2] sm:$0x1]
    %vm45 = vcmask 130048
    %v47 = vsel %vm45, %v41, 0
    %49 = vmatprep.subr.mxu0 0.0
    %v50 = vand.u32 %v42, 4294901760
    %51 = vmatpush1.msra.mxu0 %v50
    %52 = vmatprep.subr.mxu0 0.0
    %v53 = vand.u32 %v43, 4294901760
    %54 = vmatpush1.msra.mxu0 %v53
    %55 = vmatprep.subr.mxu0 0.0
    %56 = vmatpush1.msra.mxu0 0.0
    %57 = vmatprep.subr.mxu0 0.0
    %58 = vmatpush1.msra.mxu0 0.0
    %59 = vmatprep.subr.mxu0 0.0
    %60 = vmatpush1.msra.mxu0 0.0
    %61 = vmatprep.subr.mxu0 0.0
    %62 = vmatpush1.msra.mxu0 0.0
    %63 = vmatprep.subr.mxu0 0.0
    %64 = vmatpush1.msra.mxu0 0.0
    %65 = vmatprep.subr.mxu0 0.0
    %66 = vmatpush1.msra.mxu0 0.0
    %67 = vmatprep.subr.mxu0 0.0
    %68 = vmatpush1.msra.mxu0 0.0
    %69 = vmatprep.subr.mxu0 0.0
    %70 = vmatpush1.msra.mxu0 0.0
    %71 = vmatprep.subr.mxu0 0.0
    %72 = vmatpush1.msra.mxu0 0.0
    %73 = vmatprep.subr.mxu0 0.0
    %74 = vmatpush1.msra.mxu0 0.0
    %75 = vmatprep.subr.mxu0 0.0
    %76 = vmatpush1.msra.mxu0 0.0
    %77 = vmatprep.subr.mxu0 0.0
    %78 = vmatpush1.msra.mxu0 0.0
    %79 = vmatprep.subr.mxu0 0.0
    %80 = vmatpush1.msra.mxu0 0.0
    %81 = vmatprep.subr.mxu0 0.0
    %82 = vmatpush1.msra.mxu0 0.0
    %83 = vmatprep.subr.mxu0 0.0
    %84 = vmatpush1.msra.mxu0 0.0
    %85 = vmatprep.subr.mxu0 0.0
    %86 = vmatpush1.msra.mxu0 0.0
    %87 = vmatprep.subr.mxu0 0.0
    %88 = vmatpush1.msra.mxu0 0.0
    %89 = vmatprep.subr.mxu0 0.0
    %90 = vmatpush1.msra.mxu0 0.0
    %91 = vmatprep.subr.mxu0 0.0
    %92 = vmatpush1.msra.mxu0 0.0
    %93 = vmatprep.subr.mxu0 0.0
    %94 = vmatpush1.msra.mxu0 0.0
    %95 = vmatprep.subr.mxu0 0.0
    %96 = vmatpush1.msra.mxu0 0.0
    %97 = vmatprep.subr.mxu0 0.0
    %98 = vmatpush1.msra.mxu0 0.0
    %99 = vmatprep.subr.mxu0 0.0
    %100 = vmatpush1.msra.mxu0 0.0
    %101 = vmatprep.subr.mxu0 0.0
    %102 = vmatpush1.msra.mxu0 0.0
    %103 = vmatprep.subr.mxu0 0.0
    %104 = vmatpush1.msra.mxu0 0.0
    %105 = vmatprep.subr.mxu0 0.0
    %106 = vmatpush1.msra.mxu0 0.0
    %107 = vmatprep.subr.mxu0 0.0
    %108 = vmatpush1.msra.mxu0 0.0
    %109 = vmatprep.subr.mxu0 0.0
    %110 = vmatpush1.msra.mxu0 0.0
    %111 = vmatprep.subr.mxu0 0.0
    %112 = vmatpush1.msra.mxu0 0.0
    %113 = vmatprep.subr.mxu0 0.0
    %114 = vmatpush1.msra.mxu0 0.0
    %115 = vmatprep.mubr.f32.mxu0 0.0
    %v116 = vand.u32 %v47, 4294901760
    %v117 = vsub.f32 %v47, %v116
    %v118 = vand.u32 %v117, 4294901760
    %v119 = vsub.f32 %v117, %v118
    %v120 = vand.u32 %v119, 4294901760
    %121 = vmatmul.mubr.f32.gmra.mrb[0].mxu0 %v120
    %v122 = vpop.f32.mrb[0].mxu0
    %v123 = vadd.f32 %v44, %v122
    %v124 = vpop.f32.mrb[0].mxu0
    %125 = vdwg.mxu0
    %126 = vmatprep.subr.mxu0 0.0
    %v127 = vand.u32 %v42, 4294901760
    %v128 = vsub.f32 %v42, %v127
    %v129 = vand.u32 %v128, 4294901760
    %v130 = vsub.f32 %v128, %v129
    %v131 = vand.u32 %v130, 4294901760
    %132 = vmatpush1.msra.mxu0 %v131
    %133 = vmatprep.subr.mxu0 0.0
    %v134 = vand.u32 %v43, 4294901760
    %v135 = vsub.f32 %v43, %v134
    %v136 = vand.u32 %v135, 4294901760
    %v137 = vsub.f32 %v135, %v136
    %v138 = vand.u32 %v137, 4294901760
    %139 = vmatpush1.msra.mxu0 %v138
    %140 = vmatprep.subr.mxu0 0.0
    %141 = vmatpush1.msra.mxu0 0.0
    %142 = vmatprep.subr.mxu0 0.0
    %143 = vmatpush1.msra.mxu0 0.0
    %144 = vmatprep.subr.mxu0 0.0
    %145 = vmatpush1.msra.mxu0 0.0
    %146 = vmatprep.subr.mxu0 0.0
    %147 = vmatpush1.msra.mxu0 0.0
    %148 = vmatprep.subr.mxu0 0.0
    %149 = vmatpush1.msra.mxu0 0.0
    %150 = vmatprep.subr.mxu0 0.0
    %151 = vmatpush1.msra.mxu0 0.0
    %152 = vmatprep.subr.mxu0 0.0
    %153 = vmatpush1.msra.mxu0 0.0
    %154 = vmatprep.subr.mxu0 0.0
    %155 = vmatpush1.msra.mxu0 0.0
    %156 = vmatprep.subr.mxu0 0.0
    %157 = vmatpush1.msra.mxu0 0.0
    %158 = vmatprep.subr.mxu0 0.0
    %159 = vmatpush1.msra.mxu0 0.0
    %160 = vmatprep.subr.mxu0 0.0
    %161 = vmatpush1.msra.mxu0 0.0
    %162 = vmatprep.subr.mxu0 0.0
    %163 = vmatpush1.msra.mxu0 0.0
    %164 = vmatprep.subr.mxu0 0.0
    %165 = vmatpush1.msra.mxu0 0.0
    %166 = vmatprep.subr.mxu0 0.0
    %167 = vmatpush1.msra.mxu0 0.0
    %168 = vmatprep.subr.mxu0 0.0
    %169 = vmatpush1.msra.mxu0 0.0
    %170 = vmatprep.subr.mxu0 0.0
    %171 = vmatpush1.msra.mxu0 0.0
    %172 = vmatprep.subr.mxu0 0.0
    %173 = vmatpush1.msra.mxu0 0.0
    %174 = vmatprep.subr.mxu0 0.0
    %175 = vmatpush1.msra.mxu0 0.0
    %176 = vmatprep.subr.mxu0 0.0
    %177 = vmatpush1.msra.mxu0 0.0
    %178 = vmatprep.subr.mxu0 0.0
    %179 = vmatpush1.msra.mxu0 0.0
    %180 = vmatprep.subr.mxu0 0.0
    %181 = vmatpush1.msra.mxu0 0.0
    %182 = vmatprep.subr.mxu0 0.0
    %183 = vmatpush1.msra.mxu0 0.0
    %184 = vmatprep.subr.mxu0 0.0
    %185 = vmatpush1.msra.mxu0 0.0
    %186 = vmatprep.subr.mxu0 0.0
    %187 = vmatpush1.msra.mxu0 0.0
    %188 = vmatprep.subr.mxu0 0.0
    %189 = vmatpush1.msra.mxu0 0.0
    %190 = vmatprep.subr.mxu0 0.0
    %191 = vmatpush1.msra.mxu0 0.0
    %192 = vmatprep.subr.mxu0 0.0
    %193 = vmatpush1.msra.mxu0 0.0
    %194 = vmatprep.subr.mxu0 0.0
    %195 = vmatpush1.msra.mxu0 0.0
    %196 = vmatprep.subr.mxu0 0.0
    %197 = vmatpush1.msra.mxu0 0.0
    %198 = vmatprep.subr.mxu0 0.0
    %199 = vmatpush1.msra.mxu0 0.0
    %200 = vmatprep.mubr.f32.mxu0 0.0
    %v201 = vand.u32 %v47, 4294901760
    %202 = vmatmul.mubr.f32.gmra.mrb[0].mxu0 %v201
    %v203 = vpop.f32.mrb[0].mxu0
    %v204 = vadd.f32 %v123, %v203
    %v205 = vpop.f32.mrb[0].mxu0
    %206 = vdwg.mxu0
    %207 = vmatprep.subr.mxu0 0.0
    %v208 = vand.u32 %v42, 4294901760
    %v209 = vsub.f32 %v42, %v208
    %210 = vmatpush1.msra.mxu0 %v209
    %211 = vmatprep.subr.mxu0 0.0
    %v212 = vand.u32 %v43, 4294901760
    %v213 = vsub.f32 %v43, %v212
    %214 = vmatpush1.msra.mxu0 %v213
    %215 = vmatprep.subr.mxu0 0.0
    %216 = vmatpush1.msra.mxu0 0.0
    %217 = vmatprep.subr.mxu0 0.0
    %218 = vmatpush1.msra.mxu0 0.0
    %219 = vmatprep.subr.mxu0 0.0
    %220 = vmatpush1.msra.mxu0 0.0
    %221 = vmatprep.subr.mxu0 0.0
    %222 = vmatpush1.msra.mxu0 0.0
    %223 = vmatprep.subr.mxu0 0.0
    %224 = vmatpush1.msra.mxu0 0.0
    %225 = vmatprep.subr.mxu0 0.0
    %226 = vmatpush1.msra.mxu0 0.0
    %227 = vmatprep.subr.mxu0 0.0
    %228 = vmatpush1.msra.mxu0 0.0
    %229 = vmatprep.subr.mxu0 0.0
    %230 = vmatpush1.msra.mxu0 0.0
    %231 = vmatprep.subr.mxu0 0.0
    %232 = vmatpush1.msra.mxu0 0.0
    %233 = vmatprep.subr.mxu0 0.0
    %234 = vmatpush1.msra.mxu0 0.0
    %235 = vmatprep.subr.mxu0 0.0
    %236 = vmatpush1.msra.mxu0 0.0
    %237 = vmatprep.subr.mxu0 0.0
    %238 = vmatpush1.msra.mxu0 0.0
    %239 = vmatprep.subr.mxu0 0.0
    %240 = vmatpush1.msra.mxu0 0.0
    %241 = vmatprep.subr.mxu0 0.0
    %242 = vmatpush1.msra.mxu0 0.0
    %243 = vmatprep.subr.mxu0 0.0
    %244 = vmatpush1.msra.mxu0 0.0
    %245 = vmatprep.subr.mxu0 0.0
    %246 = vmatpush1.msra.mxu0 0.0
    %247 = vmatprep.subr.mxu0 0.0
    %248 = vmatpush1.msra.mxu0 0.0
    %249 = vmatprep.subr.mxu0 0.0
    %250 = vmatpush1.msra.mxu0 0.0
    %251 = vmatprep.subr.mxu0 0.0
    %252 = vmatpush1.msra.mxu0 0.0
    %253 = vmatprep.subr.mxu0 0.0
    %254 = vmatpush1.msra.mxu0 0.0
    %255 = vmatprep.subr.mxu0 0.0
    %256 = vmatpush1.msra.mxu0 0.0
    %257 = vmatprep.subr.mxu0 0.0
    %258 = vmatpush1.msra.mxu0 0.0
    %259 = vmatprep.subr.mxu0 0.0
    %260 = vmatpush1.msra.mxu0 0.0
    %261 = vmatprep.subr.mxu0 0.0
    %262 = vmatpush1.msra.mxu0 0.0
    %263 = vmatprep.subr.mxu0 0.0
    %264 = vmatpush1.msra.mxu0 0.0
    %265 = vmatprep.subr.mxu0 0.0
    %266 = vmatpush1.msra.mxu0 0.0
    %267 = vmatprep.subr.mxu0 0.0
    %268 = vmatpush1.msra.mxu0 0.0
    %269 = vmatprep.subr.mxu0 0.0
    %270 = vmatpush1.msra.mxu0 0.0
    %271 = vmatprep.subr.mxu0 0.0
    %272 = vmatpush1.msra.mxu0 0.0
    %273 = vmatprep.subr.mxu0 0.0
    %274 = vmatpush1.msra.mxu0 0.0
    %275 = vmatprep.mubr.f32.mxu0 0.0
    %v276 = vand.u32 %v47, 4294901760
    %v277 = vsub.f32 %v47, %v276
    %278 = vmatmul.mubr.f32.gmra.mrb[0].mxu0 %v277
    %v279 = vpop.f32.mrb[0].mxu0
    %v280 = vadd.f32 %v204, %v279
    %v281 = vpop.f32.mrb[0].mxu0
    %282 = vdwg.mxu0
    %283 = vmatprep.subr.mxu0 0.0
    %v284 = vand.u32 %v42, 4294901760
    %285 = vmatpush1.msra.mxu0 %v284
    %286 = vmatprep.subr.mxu0 0.0
    %v287 = vand.u32 %v43, 4294901760
    %288 = vmatpush1.msra.mxu0 %v287
    %289 = vmatprep.subr.mxu0 0.0
    %290 = vmatpush1.msra.mxu0 0.0
    %291 = vmatprep.subr.mxu0 0.0
    %292 = vmatpush1.msra.mxu0 0.0
    %293 = vmatprep.subr.mxu0 0.0
    %294 = vmatpush1.msra.mxu0 0.0
    %295 = vmatprep.subr.mxu0 0.0
    %296 = vmatpush1.msra.mxu0 0.0
    %297 = vmatprep.subr.mxu0 0.0
    %298 = vmatpush1.msra.mxu0 0.0
    %299 = vmatprep.subr.mxu0 0.0
    %300 = vmatpush1.msra.mxu0 0.0
    %301 = vmatprep.subr.mxu0 0.0
    %302 = vmatpush1.msra.mxu0 0.0
    %303 = vmatprep.subr.mxu0 0.0
    %304 = vmatpush1.msra.mxu0 0.0
    %305 = vmatprep.subr.mxu0 0.0
    %306 = vmatpush1.msra.mxu0 0.0
    %307 = vmatprep.subr.mxu0 0.0
    %308 = vmatpush1.msra.mxu0 0.0
    %309 = vmatprep.subr.mxu0 0.0
    %310 = vmatpush1.msra.mxu0 0.0
    %311 = vmatprep.subr.mxu0 0.0
    %312 = vmatpush1.msra.mxu0 0.0
    %313 = vmatprep.subr.mxu0 0.0
    %314 = vmatpush1.msra.mxu0 0.0
    %315 = vmatprep.subr.mxu0 0.0
    %316 = vmatpush1.msra.mxu0 0.0
    %317 = vmatprep.subr.mxu0 0.0
    %318 = vmatpush1.msra.mxu0 0.0
    %319 = vmatprep.subr.mxu0 0.0
    %320 = vmatpush1.msra.mxu0 0.0
    %321 = vmatprep.subr.mxu0 0.0
    %322 = vmatpush1.msra.mxu0 0.0
    %323 = vmatprep.subr.mxu0 0.0
    %324 = vmatpush1.msra.mxu0 0.0
    %325 = vmatprep.subr.mxu0 0.0
    %326 = vmatpush1.msra.mxu0 0.0
    %327 = vmatprep.subr.mxu0 0.0
    %328 = vmatpush1.msra.mxu0 0.0
    %329 = vmatprep.subr.mxu0 0.0
    %330 = vmatpush1.msra.mxu0 0.0
    %331 = vmatprep.subr.mxu0 0.0
    %332 = vmatpush1.msra.mxu0 0.0
    %333 = vmatprep.subr.mxu0 0.0
    %334 = vmatpush1.msra.mxu0 0.0
    %335 = vmatprep.subr.mxu0 0.0
    %336 = vmatpush1.msra.mxu0 0.0
    %337 = vmatprep.subr.mxu0 0.0
    %338 = vmatpush1.msra.mxu0 0.0
    %339 = vmatprep.subr.mxu0 0.0
    %340 = vmatpush1.msra.mxu0 0.0
    %341 = vmatprep.subr.mxu0 0.0
    %342 = vmatpush1.msra.mxu0 0.0
    %343 = vmatprep.subr.mxu0 0.0
    %344 = vmatpush1.msra.mxu0 0.0
    %345 = vmatprep.subr.mxu0 0.0
    %346 = vmatpush1.msra.mxu0 0.0
    %347 = vmatprep.subr.mxu0 0.0
    %348 = vmatpush1.msra.mxu0 0.0
    %349 = vmatprep.mubr.f32.mxu0 0.0
    %v350 = vand.u32 %v47, 4294901760
    %v351 = vsub.f32 %v47, %v350
    %v352 = vand.u32 %v351, 4294901760
    %353 = vmatmul.mubr.f32.gmra.mrb[0].mxu0 %v352
    %v354 = vpop.f32.mrb[0].mxu0
    %v355 = vadd.f32 %v280, %v354
    %v356 = vpop.f32.mrb[0].mxu0
    %357 = vdwg.mxu0
    %358 = vmatprep.subr.mxu0 0.0
    %v359 = vand.u32 %v42, 4294901760
    %v360 = vsub.f32 %v42, %v359
    %v361 = vand.u32 %v360, 4294901760
    %362 = vmatpush1.msra.mxu0 %v361
    %363 = vmatprep.subr.mxu0 0.0
    %v364 = vand.u32 %v43, 4294901760
    %v365 = vsub.f32 %v43, %v364
    %v366 = vand.u32 %v365, 4294901760
    %367 = vmatpush1.msra.mxu0 %v366
    %368 = vmatprep.subr.mxu0 0.0
    %369 = vmatpush1.msra.mxu0 0.0
    %370 = vmatprep.subr.mxu0 0.0
    %371 = vmatpush1.msra.mxu0 0.0
    %372 = vmatprep.subr.mxu0 0.0
    %373 = vmatpush1.msra.mxu0 0.0
    %374 = vmatprep.subr.mxu0 0.0
    %375 = vmatpush1.msra.mxu0 0.0
    %376 = vmatprep.subr.mxu0 0.0
    %377 = vmatpush1.msra.mxu0 0.0
    %378 = vmatprep.subr.mxu0 0.0
    %379 = vmatpush1.msra.mxu0 0.0
    %380 = vmatprep.subr.mxu0 0.0
    %381 = vmatpush1.msra.mxu0 0.0
    %382 = vmatprep.subr.mxu0 0.0
    %383 = vmatpush1.msra.mxu0 0.0
    %384 = vmatprep.subr.mxu0 0.0
    %385 = vmatpush1.msra.mxu0 0.0
    %386 = vmatprep.subr.mxu0 0.0
    %387 = vmatpush1.msra.mxu0 0.0
    %388 = vmatprep.subr.mxu0 0.0
    %389 = vmatpush1.msra.mxu0 0.0
    %390 = vmatprep.subr.mxu0 0.0
    %391 = vmatpush1.msra.mxu0 0.0
    %392 = vmatprep.subr.mxu0 0.0
    %393 = vmatpush1.msra.mxu0 0.0
    %394 = vmatprep.subr.mxu0 0.0
    %395 = vmatpush1.msra.mxu0 0.0
    %396 = vmatprep.subr.mxu0 0.0
    %397 = vmatpush1.msra.mxu0 0.0
    %398 = vmatprep.subr.mxu0 0.0
    %399 = vmatpush1.msra.mxu0 0.0
    %400 = vmatprep.subr.mxu0 0.0
    %401 = vmatpush1.msra.mxu0 0.0
    %402 = vmatprep.subr.mxu0 0.0
    %403 = vmatpush1.msra.mxu0 0.0
    %404 = vmatprep.subr.mxu0 0.0
    %405 = vmatpush1.msra.mxu0 0.0
    %406 = vmatprep.subr.mxu0 0.0
    %407 = vmatpush1.msra.mxu0 0.0
    %408 = vmatprep.subr.mxu0 0.0
    %409 = vmatpush1.msra.mxu0 0.0
    %410 = vmatprep.subr.mxu0 0.0
    %411 = vmatpush1.msra.mxu0 0.0
    %412 = vmatprep.subr.mxu0 0.0
    %413 = vmatpush1.msra.mxu0 0.0
    %414 = vmatprep.subr.mxu0 0.0
    %415 = vmatpush1.msra.mxu0 0.0
    %416 = vmatprep.subr.mxu0 0.0
    %417 = vmatpush1.msra.mxu0 0.0
    %418 = vmatprep.subr.mxu0 0.0
    %419 = vmatpush1.msra.mxu0 0.0
    %420 = vmatprep.subr.mxu0 0.0
    %421 = vmatpush1.msra.mxu0 0.0
    %422 = vmatprep.subr.mxu0 0.0
    %423 = vmatpush1.msra.mxu0 0.0
    %424 = vmatprep.subr.mxu0 0.0
    %425 = vmatpush1.msra.mxu0 0.0
    %426 = vmatprep.subr.mxu0 0.0
    %427 = vmatpush1.msra.mxu0 0.0
    %428 = vmatprep.mubr.f32.mxu0 0.0
    %v429 = vand.u32 %v47, 4294901760
    %430 = vmatmul.mubr.f32.gmra.mrb[0].mxu0 %v429
    %v431 = vpop.f32.mrb[0].mxu0
    %v432 = vadd.f32 %v355, %v431
    %v433 = vpop.f32.mrb[0].mxu0
    %434 = vdwg.mxu0
    %435 = vmatprep.subr.mxu0 0.0
    %v436 = vand.u32 %v42, 4294901760
    %437 = vmatpush1.msra.mxu0 %v436
    %438 = vmatprep.subr.mxu0 0.0
    %v439 = vand.u32 %v43, 4294901760
    %440 = vmatpush1.msra.mxu0 %v439
    %441 = vmatprep.subr.mxu0 0.0
    %442 = vmatpush1.msra.mxu0 0.0
    %443 = vmatprep.subr.mxu0 0.0
    %444 = vmatpush1.msra.mxu0 0.0
    %445 = vmatprep.subr.mxu0 0.0
    %446 = vmatpush1.msra.mxu0 0.0
    %447 = vmatprep.subr.mxu0 0.0
    %448 = vmatpush1.msra.mxu0 0.0
    %449 = vmatprep.subr.mxu0 0.0
    %450 = vmatpush1.msra.mxu0 0.0
    %451 = vmatprep.subr.mxu0 0.0
    %452 = vmatpush1.msra.mxu0 0.0
    %453 = vmatprep.subr.mxu0 0.0
    %454 = vmatpush1.msra.mxu0 0.0
    %455 = vmatprep.subr.mxu0 0.0
    %456 = vmatpush1.msra.mxu0 0.0
    %457 = vmatprep.subr.mxu0 0.0
    %458 = vmatpush1.msra.mxu0 0.0
    %459 = vmatprep.subr.mxu0 0.0
    %460 = vmatpush1.msra.mxu0 0.0
    %461 = vmatprep.subr.mxu0 0.0
    %462 = vmatpush1.msra.mxu0 0.0
    %463 = vmatprep.subr.mxu0 0.0
    %464 = vmatpush1.msra.mxu0 0.0
    %465 = vmatprep.subr.mxu0 0.0
    %466 = vmatpush1.msra.mxu0 0.0
    %467 = vmatprep.subr.mxu0 0.0
    %468 = vmatpush1.msra.mxu0 0.0
    %469 = vmatprep.subr.mxu0 0.0
    %470 = vmatpush1.msra.mxu0 0.0
    %471 = vmatprep.subr.mxu0 0.0
    %472 = vmatpush1.msra.mxu0 0.0
    %473 = vmatprep.subr.mxu0 0.0
    %474 = vmatpush1.msra.mxu0 0.0
    %475 = vmatprep.subr.mxu0 0.0
    %476 = vmatpush1.msra.mxu0 0.0
    %477 = vmatprep.subr.mxu0 0.0
    %478 = vmatpush1.msra.mxu0 0.0
    %479 = vmatprep.subr.mxu0 0.0
    %480 = vmatpush1.msra.mxu0 0.0
    %481 = vmatprep.subr.mxu0 0.0
    %482 = vmatpush1.msra.mxu0 0.0
    %483 = vmatprep.subr.mxu0 0.0
    %484 = vmatpush1.msra.mxu0 0.0
    %485 = vmatprep.subr.mxu0 0.0
    %486 = vmatpush1.msra.mxu0 0.0
    %487 = vmatprep.subr.mxu0 0.0
    %488 = vmatpush1.msra.mxu0 0.0
    %489 = vmatprep.subr.mxu0 0.0
    %490 = vmatpush1.msra.mxu0 0.0
    %491 = vmatprep.subr.mxu0 0.0
    %492 = vmatpush1.msra.mxu0 0.0
    %493 = vmatprep.subr.mxu0 0.0
    %494 = vmatpush1.msra.mxu0 0.0
    %495 = vmatprep.subr.mxu0 0.0
    %496 = vmatpush1.msra.mxu0 0.0
    %497 = vmatprep.subr.mxu0 0.0
    %498 = vmatpush1.msra.mxu0 0.0
    %499 = vmatprep.subr.mxu0 0.0
    %500 = vmatpush1.msra.mxu0 0.0
    %501 = vmatprep.mubr.f32.mxu0 0.0
    %v502 = vand.u32 %v47, 4294901760
    %503 = vmatmul.mubr.f32.gmra.mrb[0].mxu0 %v502
    %v504 = vpop.f32.mrb[0].mxu0
    %v505 = vadd.f32 %v432, %v504
    %v506 = vpop.f32.mrb[0].mxu0
    %507 = vdwg.mxu0
    %508 = vst [vmem:[#allocation7] sm:$0x1] %v505
    // Predicated region
    $region22: #{tpu_custom_call.1} parent=1 // pred_check
      _
    $region23: #{tpu_custom_call.1} parent=1 // pred_check_branch
      %510 = sbr.rel (0) target = $region25
    $region24: #{tpu_custom_call.1} parent=1 // pred_region
      %s512 = ssub.s32 16, 16
      %513 = vsyncadd [#allocation4], %s512
      %s515 = sshll.u32 [#allocation7], 4
      %s516 = int_to_ptr.vmem [resolvable:$true] %s515
      %518 = dma.vmem_to_hbm [thread:$0]  %s516, 16, %s3, [#allocation4]
    $region25: #{tpu_custom_call.1} parent=1 // pred_fallthru
      _
    // Predicated region
    $region26: #{tpu_custom_call.1} parent=1 // pred_check
      _
    $region27: #{tpu_custom_call.1} parent=1 // pred_check_branch
      %520 = sbr.rel (0) target = $region29
    $region28: #{tpu_custom_call.1} parent=1 // pred_region
      %521 = dma.done [#allocation4], 16
    $region29: #{tpu_custom_call.1} parent=1 // pred_fallthru
      _
    %522 = vsyncpa [#allocation3], 1
    %523 = vsyncpa [#allocation6], 1
    %524 = vsyncpa [#allocation4], 1

</llo_original>
